<compile_context>
chip_gen: v7x
topology: tpu7x:2x2x1
jax: 0.10.0
libtpu: 0.0.40
codegen_flags: <defaults>
</compile_context>

<pallas_src>
import jax
import jax.numpy as jnp
from jax.experimental import pallas as pl
from jax.experimental.pallas import tpu as pltpu

LANE = 128  # TPU lane width

# Column layout of the packed (8, 128) parameter block.
W1_COL, B1_COL = 0, 8     # w1: rows 0:6, cols 0:8   | b1: rows 0:6, col 8
W2_COL, B2_COL = 9, 15    # w2: rows 0:4, cols 9:15  | b2: rows 0:4, col 15
W3_COL, B3_COL = 16, 20   # w3: row  0,   cols 16:20 | b3: row  0,   col 20


def pack_params(w1, b1, w2, b2, w3, b3):
    """Pack all layer parameters (87 values) into a single (8, 128) f32 tile."""
    p = jnp.zeros((8, 128), jnp.float32)
    p = p.at[0:6, W1_COL:W1_COL + 8].set(jnp.asarray(w1, jnp.float32))
    p = p.at[0:6, B1_COL].set(jnp.asarray(b1, jnp.float32))
    p = p.at[0:4, W2_COL:W2_COL + 6].set(jnp.asarray(w2, jnp.float32))
    p = p.at[0:4, B2_COL].set(jnp.asarray(b2, jnp.float32))
    p = p.at[0:1, W3_COL:W3_COL + 4].set(jnp.asarray(w3, jnp.float32))
    p = p.at[0, B3_COL].set(jnp.asarray(b3, jnp.float32)[0])
    return p


def _vpu_layer(p, h, *, w_col0, b_col, n_in, n_out):
    """sigmoid(W @ h + b) as unrolled VPU broadcast-MACs (K <= 6).

    p: (8, 128) packed parameter block; W lives at p[0:n_out, w_col0:w_col0+n_in],
       b at p[0:n_out, b_col].
    h: (rows >= n_in, TILE_N) activations, batch in lanes; only rows [0, n_in) read.
    """
    tile_n = h.shape[1]
    acc = jnp.broadcast_to(p[0:n_out, b_col:b_col + 1], (n_out, tile_n))
    for k in range(n_in):  # static unroll
        acc = acc + p[0:n_out, w_col0 + k:w_col0 + k + 1] * h[k:k + 1, :]
    return jax.nn.sigmoid(acc)


def mlp_kernel(xt_ref, p_ref, o_ref):
    xt = xt_ref[...]          # (8, TILE_N) f32, batch in lanes
    p = p_ref[...]            # (8, 128) f32 packed parameters

    # Layer 1 (8 -> 6) on the MXU.  Use the full 8-row slices (rows 6, 7 are
    # zero-padded) so the intermediate stays natively (8, TILE_N) tiled; the
    # junk rows 6, 7 (= sigmoid(0)) are never read by layer 2.
    w1 = p[:, W1_COL:W1_COL + 8]          # (8, 8), rows 6..7 zero
    b1 = p[:, B1_COL:B1_COL + 1]          # (8, 1), rows 6..7 zero
    z1 = jnp.dot(w1, xt, preferred_element_type=jnp.float32,
                 precision=jax.lax.Precision.HIGHEST)
    h1 = jax.nn.sigmoid(z1 + b1)          # (8, TILE_N), rows 0..5 valid

    # Layers 2 (6 -> 4) and 3 (4 -> 1): unrolled VPU broadcast-MACs.
    h2 = _vpu_layer(p, h1, w_col0=W2_COL, b_col=B2_COL, n_in=6, n_out=4)
    o_ref[...] = _vpu_layer(p, h2, w_col0=W3_COL, b_col=B3_COL, n_in=4, n_out=1)


def mlp_forward(x, w1, b1, w2, b2, w3, b3, *, max_tile_n=65536):
    """x: (N, 8); weights/biases in PyTorch nn.Linear layout: W (out, in), b (out,)."""
    n, d_in = x.shape
    assert d_in == 8

    n_lanes = pl.cdiv(n, LANE) * LANE
    # Tile: up to ~2 MiB of x per step (64K lanes), but no larger than half the
    # lane-padded batch so the "parallel" grid has >= 2 steps (v7x megacore).
    tile_n = min(max_tile_n, max(LANE, pl.cdiv(n_lanes, 2 * LANE) * LANE))
    n_pad = pl.cdiv(n_lanes, tile_n) * tile_n
    grid = (n_pad // tile_n,)

    # Pad + transpose (no zeros+scatter pass): (N, 8) -> (8, n_pad).
    xt = jnp.pad(jnp.asarray(x, jnp.float32), ((0, n_pad - n), (0, 0))).T

    params = pack_params(w1, b1, w2, b2, w3, b3)

    y_t = pl.pallas_call(
        mlp_kernel,
        out_shape=jax.ShapeDtypeStruct((1, n_pad), jnp.float32),
        grid=grid,
        in_specs=[
            pl.BlockSpec((d_in, tile_n), lambda i: (0, i)),   # x tile, batch in lanes
            pl.BlockSpec((8, 128), lambda i: (0, 0)),         # pinned packed params
        ],
        out_specs=pl.BlockSpec((1, tile_n), lambda i: (0, i)),  # lane-dense store
        compiler_params=pltpu.CompilerParams(
            dimension_semantics=("parallel",),
        ),
    )(xt, params)

    return y_t[:, :n].T                                        # (N, 1)


def init_params(key):
    # PyTorch nn.Linear default init: U(-1/sqrt(fan_in), 1/sqrt(fan_in)),
    # W shaped (out_features, in_features), b shaped (out_features,).
    dims = [(6, 8), (4, 6), (1, 4)]
    params = []
    for i, (fan_out, fan_in) in enumerate(dims):
        kw, kb = jax.random.split(jax.random.fold_in(key, i))
        bound = 1.0 / (fan_in ** 0.5)
        w = jax.random.uniform(kw, (fan_out, fan_in), jnp.float32, -bound, bound)
        b = jax.random.uniform(kb, (fan_out,), jnp.float32, -bound, bound)
        params.extend([w, b])
    return params


def ref_forward(x, w1, b1, w2, b2, w3, b3):
    # Pure-VPU f32 reference (no matmul), PyTorch convention: sigmoid(x @ W.T + b).
    h = jnp.asarray(x, jnp.float32)
    for w, b in ((w1, b1), (w2, b2), (w3, b3)):
        h = jax.nn.sigmoid((h[:, None, :] * w[None, :, :]).sum(-1) + b)
    return h


if __name__ == "__main__":
    # TODO(synk): the original script loads diabetes.csv.gz from disk; here we
    # use deterministic random inputs of the same feature width (8) instead.
    key = jax.random.PRNGKey(0)
    kx, kp = jax.random.split(key)
    batch = 300  # exercises lane padding and a 2-step grid
    x = jax.random.normal(kx, (batch, 8), jnp.float32)
    w1, b1, w2, b2, w3, b3 = init_params(kp)

    out = mlp_forward(x, w1, b1, w2, b2, w3, b3)
    jax.block_until_ready(out)

    ref = ref_forward(x, w1, b1, w2, b2, w3, b3)

    assert out.shape == (batch, 1)
    assert jnp.allclose(out, ref, atol=1e-4, rtol=1e-4)

    print("KERNEL_OK")
</pallas_src>

<mosaic_0001>
module attributes {stable_mosaic.version = 11 : i64} {
  func.func @mlp_kernel(%arg0: i32, %arg1: memref<8x256xf32, #tpu.memory_space<vmem>>, %arg2: memref<8x128xf32, #tpu.memory_space<vmem>>, %arg3: memref<1x256xf32, #tpu.memory_space<vmem>>) attributes {dimension_semantics = [#tpu.dimension_semantics<parallel>], iteration_bounds = array<i64: 2>, scalar_prefetch = 0 : i64, scratch_operands = 0 : i64, tpu.core_type = #tpu.core_type<tc>, window_params = [{transform_indices = @transform_0, window_bounds = array<i64: 8, 256>}, {pipeline_mode = #tpu.pipeline_mode<synchronous>, transform_indices = @transform_1, window_bounds = array<i64: 8, 128>}, {transform_indices = @transform_2, window_bounds = array<i64: 1, 256>}]} {
    %c0 = arith.constant 0 : index
    %c0_0 = arith.constant 0 : index
    %0 = vector.load %arg1[%c0, %c0_0] : memref<8x256xf32, #tpu.memory_space<vmem>>, vector<8x256xf32>
    %c0_1 = arith.constant 0 : index
    %c0_2 = arith.constant 0 : index
    %1 = vector.load %arg2[%c0_1, %c0_2] : memref<8x128xf32, #tpu.memory_space<vmem>>, vector<8x128xf32>
    %2 = vector.extract_strided_slice %1 {offsets = [0, 0], sizes = [8, 8], strides = [1, 1]} : vector<8x128xf32> to vector<8x8xf32>
    %3 = vector.extract_strided_slice %1 {offsets = [0, 8], sizes = [8, 1], strides = [1, 1]} : vector<8x128xf32> to vector<8x1xf32>
    %cst = arith.constant dense<0.000000e+00> : vector<8x256xf32>
    %4 = tpu.matmul %2, %0, %cst {dimension_numbers = #tpu.dot_dimension_numbers<[1], [0], [0], [1], [0, 0, 1, 1], [], []>, precision = #tpu.contract_precision<fp32>} : vector<8x8xf32>, vector<8x256xf32>, vector<8x256xf32> -> vector<8x256xf32>
    %5 = vector.broadcast %3 : vector<8x1xf32> to vector<8x256xf32>
    %6 = arith.addf %4, %5 : vector<8x256xf32>
    %7 = arith.negf %6 : vector<8x256xf32>
    %8 = math.exp %7 : vector<8x256xf32>
    %cst_3 = arith.constant 1.000000e+00 : f32
    %9 = vector.broadcast %cst_3 : f32 to vector<8x256xf32>
    %10 = arith.addf %9, %8 : vector<8x256xf32>
    %11 = arith.divf %9, %10 : vector<8x256xf32>
    %12 = vector.extract_strided_slice %1 {offsets = [0, 15], sizes = [4, 1], strides = [1, 1]} : vector<8x128xf32> to vector<4x1xf32>
    %13 = vector.shape_cast %12 : vector<4x1xf32> to vector<4x1xf32>
    %14 = vector.broadcast %13 : vector<4x1xf32> to vector<4x256xf32>
    %15 = vector.extract_strided_slice %1 {offsets = [0, 9], sizes = [4, 1], strides = [1, 1]} : vector<8x128xf32> to vector<4x1xf32>
    %16 = vector.extract_strided_slice %11 {offsets = [0, 0], sizes = [1, 256], strides = [1, 1]} : vector<8x256xf32> to vector<1x256xf32>
    %17 = vector.broadcast %15 : vector<4x1xf32> to vector<4x256xf32>
    %18 = vector.broadcast %16 : vector<1x256xf32> to vector<4x256xf32>
    %19 = arith.mulf %17, %18 : vector<4x256xf32>
    %20 = arith.addf %14, %19 : vector<4x256xf32>
    %21 = vector.extract_strided_slice %1 {offsets = [0, 10], sizes = [4, 1], strides = [1, 1]} : vector<8x128xf32> to vector<4x1xf32>
    %22 = vector.extract_strided_slice %11 {offsets = [1, 0], sizes = [1, 256], strides = [1, 1]} : vector<8x256xf32> to vector<1x256xf32>
    %23 = vector.broadcast %21 : vector<4x1xf32> to vector<4x256xf32>
    %24 = vector.broadcast %22 : vector<1x256xf32> to vector<4x256xf32>
    %25 = arith.mulf %23, %24 : vector<4x256xf32>
    %26 = arith.addf %20, %25 : vector<4x256xf32>
    %27 = vector.extract_strided_slice %1 {offsets = [0, 11], sizes = [4, 1], strides = [1, 1]} : vector<8x128xf32> to vector<4x1xf32>
    %28 = vector.extract_strided_slice %11 {offsets = [2, 0], sizes = [1, 256], strides = [1, 1]} : vector<8x256xf32> to vector<1x256xf32>
    %29 = vector.broadcast %27 : vector<4x1xf32> to vector<4x256xf32>
    %30 = vector.broadcast %28 : vector<1x256xf32> to vector<4x256xf32>
    %31 = arith.mulf %29, %30 : vector<4x256xf32>
    %32 = arith.addf %26, %31 : vector<4x256xf32>
    %33 = vector.extract_strided_slice %1 {offsets = [0, 12], sizes = [4, 1], strides = [1, 1]} : vector<8x128xf32> to vector<4x1xf32>
    %34 = vector.extract_strided_slice %11 {offsets = [3, 0], sizes = [1, 256], strides = [1, 1]} : vector<8x256xf32> to vector<1x256xf32>
    %35 = vector.broadcast %33 : vector<4x1xf32> to vector<4x256xf32>
    %36 = vector.broadcast %34 : vector<1x256xf32> to vector<4x256xf32>
    %37 = arith.mulf %35, %36 : vector<4x256xf32>
    %38 = arith.addf %32, %37 : vector<4x256xf32>
    %39 = vector.extract_strided_slice %1 {offsets = [0, 13], sizes = [4, 1], strides = [1, 1]} : vector<8x128xf32> to vector<4x1xf32>
    %40 = vector.extract_strided_slice %11 {offsets = [4, 0], sizes = [1, 256], strides = [1, 1]} : vector<8x256xf32> to vector<1x256xf32>
    %41 = vector.broadcast %39 : vector<4x1xf32> to vector<4x256xf32>
    %42 = vector.broadcast %40 : vector<1x256xf32> to vector<4x256xf32>
    %43 = arith.mulf %41, %42 : vector<4x256xf32>
    %44 = arith.addf %38, %43 : vector<4x256xf32>
    %45 = vector.extract_strided_slice %1 {offsets = [0, 14], sizes = [4, 1], strides = [1, 1]} : vector<8x128xf32> to vector<4x1xf32>
    %46 = vector.extract_strided_slice %11 {offsets = [5, 0], sizes = [1, 256], strides = [1, 1]} : vector<8x256xf32> to vector<1x256xf32>
    %47 = vector.broadcast %45 : vector<4x1xf32> to vector<4x256xf32>
    %48 = vector.broadcast %46 : vector<1x256xf32> to vector<4x256xf32>
    %49 = arith.mulf %47, %48 : vector<4x256xf32>
    %50 = arith.addf %44, %49 : vector<4x256xf32>
    %51 = arith.negf %50 : vector<4x256xf32>
    %52 = math.exp %51 : vector<4x256xf32>
    %cst_4 = arith.constant 1.000000e+00 : f32
    %53 = vector.broadcast %cst_4 : f32 to vector<4x256xf32>
    %54 = arith.addf %53, %52 : vector<4x256xf32>
    %55 = arith.divf %53, %54 : vector<4x256xf32>
    %56 = vector.extract_strided_slice %1 {offsets = [0, 20], sizes = [1, 1], strides = [1, 1]} : vector<8x128xf32> to vector<1x1xf32>
    %57 = vector.shape_cast %56 : vector<1x1xf32> to vector<1x1xf32>
    %58 = vector.broadcast %57 : vector<1x1xf32> to vector<1x256xf32>
    %59 = vector.extract_strided_slice %1 {offsets = [0, 16], sizes = [1, 1], strides = [1, 1]} : vector<8x128xf32> to vector<1x1xf32>
    %60 = vector.extract_strided_slice %55 {offsets = [0, 0], sizes = [1, 256], strides = [1, 1]} : vector<4x256xf32> to vector<1x256xf32>
    %61 = vector.broadcast %59 : vector<1x1xf32> to vector<1x256xf32>
    %62 = arith.mulf %61, %60 : vector<1x256xf32>
    %63 = arith.addf %58, %62 : vector<1x256xf32>
    %64 = vector.extract_strided_slice %1 {offsets = [0, 17], sizes = [1, 1], strides = [1, 1]} : vector<8x128xf32> to vector<1x1xf32>
    %65 = vector.extract_strided_slice %55 {offsets = [1, 0], sizes = [1, 256], strides = [1, 1]} : vector<4x256xf32> to vector<1x256xf32>
    %66 = vector.broadcast %64 : vector<1x1xf32> to vector<1x256xf32>
    %67 = arith.mulf %66, %65 : vector<1x256xf32>
    %68 = arith.addf %63, %67 : vector<1x256xf32>
    %69 = vector.extract_strided_slice %1 {offsets = [0, 18], sizes = [1, 1], strides = [1, 1]} : vector<8x128xf32> to vector<1x1xf32>
    %70 = vector.extract_strided_slice %55 {offsets = [2, 0], sizes = [1, 256], strides = [1, 1]} : vector<4x256xf32> to vector<1x256xf32>
    %71 = vector.broadcast %69 : vector<1x1xf32> to vector<1x256xf32>
    %72 = arith.mulf %71, %70 : vector<1x256xf32>
    %73 = arith.addf %68, %72 : vector<1x256xf32>
    %74 = vector.extract_strided_slice %1 {offsets = [0, 19], sizes = [1, 1], strides = [1, 1]} : vector<8x128xf32> to vector<1x1xf32>
    %75 = vector.extract_strided_slice %55 {offsets = [3, 0], sizes = [1, 256], strides = [1, 1]} : vector<4x256xf32> to vector<1x256xf32>
    %76 = vector.broadcast %74 : vector<1x1xf32> to vector<1x256xf32>
    %77 = arith.mulf %76, %75 : vector<1x256xf32>
    %78 = arith.addf %73, %77 : vector<1x256xf32>
    %79 = arith.negf %78 : vector<1x256xf32>
    %80 = math.exp %79 : vector<1x256xf32>
    %cst_5 = arith.constant 1.000000e+00 : f32
    %81 = vector.broadcast %cst_5 : f32 to vector<1x256xf32>
    %82 = arith.addf %81, %80 : vector<1x256xf32>
    %83 = arith.divf %81, %82 : vector<1x256xf32>
    %c0_6 = arith.constant 0 : index
    %c0_7 = arith.constant 0 : index
    %84 = vector.load %arg3[%c0_6, %c0_7] : memref<1x256xf32, #tpu.memory_space<vmem>>, vector<1x256xf32>
    tpu.vector_store %arg3[%c0_6, %c0_7], %83 {strides = array<i32>} : memref<1x256xf32, #tpu.memory_space<vmem>>, vector<1x256xf32>,
    return
  }
  func.func @transform_0(%arg0: i32) -> (i32, i32) {
    %c0_i32 = arith.constant 0 : i32
    %c0_i32_0 = arith.constant 0 : i32
    return %c0_i32, %arg0 : i32, i32
  }
  func.func @transform_1(%arg0: i32) -> (i32, i32) {
    %c0_i32 = arith.constant 0 : i32
    %c0_i32_0 = arith.constant 0 : i32
    %c0_i32_1 = arith.constant 0 : i32
    return %c0_i32, %c0_i32_0 : i32, i32
  }
  func.func @transform_2(%arg0: i32) -> (i32, i32) {
    %c0_i32 = arith.constant 0 : i32
    %c0_i32_0 = arith.constant 0 : i32
    return %c0_i32, %arg0 : i32, i32
  }
}

</mosaic_0001>

<llo_original>
// kernel: tpu_custom_call.1
$region0: #{tpu_custom_call.1}
  #allocation0 [shape = 'u32[]', space=smem, size = 0x4, offset = 0x4, fixed_abs, tag = 'smem constant byte address 0x4 - core index']
  #allocation1 [shape = 'u32[144,128]{1,0:T(1,128)}', space=vmem, size = 0x12000, scoped, tag = 'internal scratch']
  %s0 = inlined_call_operand.hbm [shape: f32[8,512], index: 0, kind: input, shape index: {}]
  %s1 = inlined_call_operand.hbm [shape: f32[8,128], index: 1, kind: input, shape index: {}]
  %s2 = inlined_call_operand.hbm [shape: f32[1,512], index: 2, kind: output, shape index: {}]
  %s3 = sld [smem:[#allocation0]]
  $region49: #{tpu_custom_call.1} parent=0
    _
  %s5 = ssub.s32 1, %s3
  %s6 = scalar_select 0, %s5, %s3
  $region1: #{tpu_custom_call.1} parent=0
    #allocation2 [shape = 'u8[16384]{0}', space=vmem, size = 0x4000, scoped, tag = 'input window, operand 0']
    #allocation3 [shape = 's32[2]{0}', space=sflag, size = 0x8, scoped, tag = 'scoped memory for tpu_custom_call.1']
    #allocation4 [shape = 's32[2]{0}', space=sflag, size = 0x8, scoped, tag = 'scoped memory for tpu_custom_call.1']
    #allocation5 [shape = 'u8[4096]{0}', space=vmem, size = 0x1000, scoped, tag = 'input window, operand 1, single buffered']
    #allocation6 [shape = 's32[1]{0}', space=sflag, size = 0x4, scoped, tag = 'scoped memory for tpu_custom_call.1']
    #allocation7 [shape = 'u8[2048]{0}', space=vmem, size = 0x800, scoped, tag = 'output window, operand 0']
    %7 = vsyncpa [#allocation3], 0
    %s8 = scalar_lea.sflag [#allocation3], 1
    %9 = vsyncpa %s8, 0
    %10 = vsyncpa [#allocation6], 0
    %11 = vsyncpa [#allocation4], 0
    %s12 = scalar_lea.sflag [#allocation4], 1
    %13 = vsyncpa %s12, 0
    loop: start=0, step=1, limit=4
    $region2: #{tpu_custom_call.1} parent=1 // loop_pre_header
      _
    $region3: #{tpu_custom_call.1} parent=1 // loop_header
      %s15 = sphi 0, %s19
      %p16 = scmp.ge.s32.totalorder %s15, 4
      %s25 = sphi 0, %s27
      %s28 = sphi 0, %s25
      %s29 = sphi 0, %s28
      %s45 = sphi 0, %s29
      %s49 = sphi 0, %s49
      %s51 = sphi 0, %s49
      %s52 = sphi 0, %s51
      %s66 = sphi 0, %s52
      %s72 = sphi 0, %s74
      %s75 = sphi 0, %s72
      %s76 = sphi 0, %s75
      %s92 = sphi 0, %s76
    $region4: #{tpu_custom_call.1} parent=1 // loop_header_branch
      %18 = sbr.rel (%p16) target = $region8
    $region5: #{tpu_custom_call.1} parent=1 // loop_body
      %s20 = ssub.s32 %s15, 1
      %s21 = ssub.s32 %s15, 2
      %s22 = sadd.s32 %s15, 1
      %s23 = ssub.s32 %s15, %s22
      %p24 = scmp.eq.s32.totalorder %s23, 0
      %s26 = sadd.s32 %s25, 1
      %s27 = scalar_select %p24, %s25, %s26
      %p30 = pneg %p24
      %p31 = scmp.eq.s32.totalorder %s15, 1
      %p32 = por %p30, %p31
      %p33 = scmp.ne.s32.totalorder %s25, %s28
      %p34 = scmp.eq.s32.totalorder %s15, 0
      %p35 = por %p33, %p34
      %p36 = scmp.ne.s32.totalorder %s25, %s28
      %p37 = scmp.eq.s32.totalorder %s20, 1
      %p38 = por %p36, %p37
      %p39 = scmp.ne.s32.totalorder %s28, %s29
      %p40 = scmp.eq.s32.totalorder %s20, 0
      %p41 = por %p39, %p40
      %p42 = scmp.ne.s32.totalorder %s28, %s29
      %p43 = scmp.eq.s32.totalorder %s21, 1
      %p44 = por %p42, %p43
      %p46 = scmp.ne.s32.totalorder %s29, %s45
      %p47 = scmp.eq.s32.totalorder %s21, 0
      %p48 = por %p46, %p47
      %s50 = sadd.s32 %s49, 1
      %p53 = scmp.eq.s32.totalorder %s15, 1
      %p54 = scmp.ne.s32.totalorder %s49, %s51
      %p55 = scmp.eq.s32.totalorder %s15, 0
      %p56 = por %p54, %p55
      %p57 = scmp.ne.s32.totalorder %s49, %s51
      %p58 = scmp.eq.s32.totalorder %s20, 1
      %p59 = por %p57, %p58
      %p60 = scmp.ne.s32.totalorder %s51, %s52
      %p61 = scmp.eq.s32.totalorder %s20, 0
      %p62 = por %p60, %p61
      %p63 = scmp.ne.s32.totalorder %s51, %s52
      %p64 = scmp.eq.s32.totalorder %s21, 1
      %p65 = por %p63, %p64
      %p67 = scmp.ne.s32.totalorder %s52, %s66
      %p68 = scmp.eq.s32.totalorder %s21, 0
      %p69 = por %p67, %p68
      %s70 = ssub.s32 %s15, %s22
      %p71 = scmp.eq.s32.totalorder %s70, 0
      %s73 = sadd.s32 %s72, 1
      %s74 = scalar_select %p71, %s72, %s73
      %p77 = pneg %p71
      %p78 = scmp.eq.s32.totalorder %s15, 1
      %p79 = por %p77, %p78
      %p80 = scmp.ne.s32.totalorder %s72, %s75
      %p81 = scmp.eq.s32.totalorder %s15, 0
      %p82 = por %p80, %p81
      %p83 = scmp.ne.s32.totalorder %s72, %s75
      %p84 = scmp.eq.s32.totalorder %s20, 1
      %p85 = por %p83, %p84
      %p86 = scmp.ne.s32.totalorder %s75, %s76
      %p87 = scmp.eq.s32.totalorder %s20, 0
      %p88 = por %p86, %p87
      %p89 = scmp.ne.s32.totalorder %s75, %s76
      %p90 = scmp.eq.s32.totalorder %s21, 1
      %p91 = por %p89, %p90
      %p93 = scmp.ne.s32.totalorder %s76, %s92
      %p94 = scmp.eq.s32.totalorder %s21, 0
      %p95 = por %p93, %p94
      %p96 = scmp.le.s32.totalorder 1, %s15
      %p97 = scmp.lt.s32.totalorder %s15, 3
      %p98 = pnand %p96, %p97
      %p99 = pneg %p98
      // Predicated region
      $region9: #{tpu_custom_call.1} parent=5 // pred_check
        _
      $region10: #{tpu_custom_call.1} parent=5 // pred_check_branch
        %101 = sbr.rel (%p98) target = $region12
      $region11: #{tpu_custom_call.1} parent=5 // pred_region
        %s102 = ssub.s32 %s15, 1
        // Predicated region
        $region13: #{tpu_custom_call.1} parent=11 // pred_check
          %p103 = pneg %p62
        $region14: #{tpu_custom_call.1} parent=11 // pred_check_branch
          %105 = sbr.rel (%p103) target = $region16
        $region15: #{tpu_custom_call.1} parent=11 // pred_region
          %s107 = ssub.s32 128, 128
          %108 = vsyncadd [#allocation6], %s107
          %s110 = sshll.u32 [#allocation5], 4
          %s111 = int_to_ptr.vmem [resolvable:$true] %s110
          %113 = dma.hbm_to_vmem [thread:$0]  %s1, 128, %s111, [#allocation6]
        $region16: #{tpu_custom_call.1} parent=11 // pred_fallthru
          _
      $region12: #{tpu_custom_call.1} parent=5 // pred_fallthru
        _
      %p114 = scmp.lt.s32.totalorder %s15, 2
      // Predicated region
      $region17: #{tpu_custom_call.1} parent=5 // pred_check
        %p115 = pneg %p114
      $region18: #{tpu_custom_call.1} parent=5 // pred_check_branch
        %117 = sbr.rel (%p115) target = $region20
      $region19: #{tpu_custom_call.1} parent=5 // pred_region
        // Predicated region
        $region21: #{tpu_custom_call.1} parent=19 // pred_check
          %p118 = pneg %p35
        $region22: #{tpu_custom_call.1} parent=19 // pred_check_branch
          %120 = sbr.rel (%p118) target = $region24
        $region23: #{tpu_custom_call.1} parent=19 // pred_region
          %s121 = sand.u32 %s25, 1
          %s122 = scalar_lea.sflag [#allocation3], %s121
          %s123 = sand.u32 %s25, 1
          %s124 = smul.addr %s123, 16
          %s125 = scalar_lea.vmem [#allocation2], %s124
          %s126 = smul.u32 2, %s15
          %s128 = ssub.s32 256, 256
          %129 = vsyncadd %s122, %s128
          %s130 = smul.addr %s126, 128
          %s131 = scalar_lea.hbm %s0, %s130
          %s133 = sshll.u32 %s125, 4
          %s134 = int_to_ptr.vmem [resolvable:$true] %s133
          %136 = dma.hbm_to_vmem [thread:$0]  %s131, 256, %s134, %s122
        $region24: #{tpu_custom_call.1} parent=19 // pred_fallthru
          _
      $region20: #{tpu_custom_call.1} parent=5 // pred_fallthru
        _
      %p137 = scmp.le.s32.totalorder 1, %s15
      %p138 = scmp.lt.s32.totalorder %s15, 3
      %p139 = pnand %p137, %p138
      %p140 = pneg %p139
      // Predicated region
      $region25: #{tpu_custom_call.1} parent=5 // pred_check
        _
      $region26: #{tpu_custom_call.1} parent=5 // pred_check_branch
        %142 = sbr.rel (%p139) target = $region28
      $region27: #{tpu_custom_call.1} parent=5 // pred_region
        %s143 = ssub.s32 %s15, 1
        %s144 = sand.u32 %s28, 1
        %s145 = scalar_lea.sflag [#allocation3], %s144
        %s146 = sand.u32 %s28, 1
        %s147 = smul.addr %s146, 16
        %s148 = scalar_lea.vmem [#allocation2], %s147
        // Predicated region
        $region29: #{tpu_custom_call.1} parent=27 // pred_check
          %p149 = pneg %p41
        $region30: #{tpu_custom_call.1} parent=27 // pred_check_branch
          %151 = sbr.rel (%p149) target = $region32
        $region31: #{tpu_custom_call.1} parent=27 // pred_region
          %152 = dma.done %s145, 256
        $region32: #{tpu_custom_call.1} parent=27 // pred_fallthru
          _
        // Predicated region
        $region33: #{tpu_custom_call.1} parent=27 // pred_check
          %p153 = pneg %p62
        $region34: #{tpu_custom_call.1} parent=27 // pred_check_branch
          %155 = sbr.rel (%p153) target = $region36
        $region35: #{tpu_custom_call.1} parent=27 // pred_region
          %156 = dma.done [#allocation6], 128
        $region36: #{tpu_custom_call.1} parent=27 // pred_fallthru
          _
        %s157 = sand.u32 %s28, 1
        %s158 = scalar_lea.sflag [#allocation3], %s157
        %s159 = sand.u32 %s28, 1
        %s160 = smul.addr %s159, 16
        %s161 = scalar_lea.vmem [#allocation2], %s160
        %p162 = pneg %p41
        %p163 = pneg %p38
        %p164 = pneg %p62
        %p165 = pneg %p59
        %p166 = pneg %p88
        %p167 = pneg %p85
        %s168 = sand.u32 %s75, 1
        %s169 = scalar_lea.sflag [#allocation4], %s168
        %s170 = sand.u32 %s75, 1
        %s171 = smul.addr %s170, 2
        %s172 = scalar_lea.vmem [#allocation7], %s171
        %s173 = smul.u32 2, %s20
        %s174 = smul.u32 2, %s20
        %v175 = vld [vmem:[%s148] sm:$0xff]
        %v176 = vld [vmem:[%s148 + $0x8] sm:$0xff]
        %v177 = vld [vmem:[#allocation5] sm:$0xff]
        %179 = vset.pattern.permute.xlu0 8
        %180 = vperm.xlu0 %179, %v177
        %v181 = vpop.permute.xlu0 %180
        %vm183 = vcmask 64512
        %v184 = vsel %vm183, %v177, 0
        %v186 = vand.u32 %v176, 4294901760
        %187 = vmatprep.subr.mxu0 %v186
        %v188 = vand.u32 %v175, 4294901760
        %189 = vmatpush1.msra.mxu0 %v188
        %190 = vmatprep.subr.mxu0 0.0
        %191 = vmatpush1.msra.mxu0 0.0
        %192 = vmatprep.subr.mxu0 0.0
        %193 = vmatpush1.msra.mxu0 0.0
        %194 = vmatprep.subr.mxu0 0.0
        %195 = vmatpush1.msra.mxu0 0.0
        %196 = vmatprep.subr.mxu0 0.0
        %197 = vmatpush1.msra.mxu0 0.0
        %198 = vmatprep.subr.mxu0 0.0
        %199 = vmatpush1.msra.mxu0 0.0
        %200 = vmatprep.subr.mxu0 0.0
        %201 = vmatpush1.msra.mxu0 0.0
        %202 = vmatprep.subr.mxu0 0.0
        %203 = vmatpush1.msra.mxu0 0.0
        %204 = vmatprep.subr.mxu0 0.0
        %205 = vmatpush1.msra.mxu0 0.0
        %206 = vmatprep.subr.mxu0 0.0
        %207 = vmatpush1.msra.mxu0 0.0
        %208 = vmatprep.subr.mxu0 0.0
        %209 = vmatpush1.msra.mxu0 0.0
        %210 = vmatprep.subr.mxu0 0.0
        %211 = vmatpush1.msra.mxu0 0.0
        %212 = vmatprep.subr.mxu0 0.0
        %213 = vmatpush1.msra.mxu0 0.0
        %214 = vmatprep.subr.mxu0 0.0
        %215 = vmatpush1.msra.mxu0 0.0
        %216 = vmatprep.subr.mxu0 0.0
        %217 = vmatpush1.msra.mxu0 0.0
        %218 = vmatprep.subr.mxu0 0.0
        %219 = vmatpush1.msra.mxu0 0.0
        %220 = vmatprep.subr.mxu0 0.0
        %221 = vmatpush1.msra.mxu0 0.0
        %222 = vmatprep.subr.mxu0 0.0
        %223 = vmatpush1.msra.mxu0 0.0
        %224 = vmatprep.subr.mxu0 0.0
        %225 = vmatpush1.msra.mxu0 0.0
        %226 = vmatprep.subr.mxu0 0.0
        %227 = vmatpush1.msra.mxu0 0.0
        %228 = vmatprep.subr.mxu0 0.0
        %229 = vmatpush1.msra.mxu0 0.0
        %230 = vmatprep.subr.mxu0 0.0
        %231 = vmatpush1.msra.mxu0 0.0
        %232 = vmatprep.subr.mxu0 0.0
        %233 = vmatpush1.msra.mxu0 0.0
        %234 = vmatprep.subr.mxu0 0.0
        %235 = vmatpush1.msra.mxu0 0.0
        %236 = vmatprep.subr.mxu0 0.0
        %237 = vmatpush1.msra.mxu0 0.0
        %238 = vmatprep.subr.mxu0 0.0
        %239 = vmatpush1.msra.mxu0 0.0
        %240 = vmatprep.subr.mxu0 0.0
        %241 = vmatpush1.msra.mxu0 0.0
        %242 = vmatprep.subr.mxu0 0.0
        %243 = vmatpush1.msra.mxu0 0.0
        %244 = vmatprep.subr.mxu0 0.0
        %245 = vmatpush1.msra.mxu0 0.0
        %246 = vmatprep.subr.mxu0 0.0
        %247 = vmatpush1.msra.mxu0 0.0
        %248 = vmatprep.subr.mxu0 0.0
        %249 = vmatpush1.msra.mxu0 0.0
        %250 = vmatprep.subr.mxu0 0.0
        %251 = vmatpush1.msra.mxu0 0.0
        %252 = vmatprep.mubr.f32.mxu0 0.0
        %v253 = vand.u32 %v184, 4294901760
        %v254 = vsub.f32 %v184, %v253
        %v255 = vand.u32 %v254, 4294901760
        %v256 = vsub.f32 %v254, %v255
        %v257 = vand.u32 %v256, 4294901760
        %258 = vmatmul.mubr.f32.gmra.mrb[0].mxu0 %v257
        %v259 = vpop.f32.mrb[0].mxu0
        %v260 = vadd.f32 %v181, %v259
        %v261 = vpop.f32.mrb[0].mxu0
        %v262 = vadd.f32 %v181, %v261
        %263 = vdwg.mxu0
        %v264 = vand.u32 %v176, 4294901760
        %v265 = vsub.f32 %v176, %v264
        %v266 = vand.u32 %v265, 4294901760
        %v267 = vsub.f32 %v265, %v266
        %v268 = vand.u32 %v267, 4294901760
        %269 = vmatprep.subr.mxu0 %v268
        %v270 = vand.u32 %v175, 4294901760
        %v271 = vsub.f32 %v175, %v270
        %v272 = vand.u32 %v271, 4294901760
        %v273 = vsub.f32 %v271, %v272
        %v274 = vand.u32 %v273, 4294901760
        %275 = vmatpush1.msra.mxu0 %v274
        %276 = vmatprep.subr.mxu0 0.0
        %277 = vmatpush1.msra.mxu0 0.0
        %278 = vmatprep.subr.mxu0 0.0
        %279 = vmatpush1.msra.mxu0 0.0
        %280 = vmatprep.subr.mxu0 0.0
        %281 = vmatpush1.msra.mxu0 0.0
        %282 = vmatprep.subr.mxu0 0.0
        %283 = vmatpush1.msra.mxu0 0.0
        %284 = vmatprep.subr.mxu0 0.0
        %285 = vmatpush1.msra.mxu0 0.0
        %286 = vmatprep.subr.mxu0 0.0
        %287 = vmatpush1.msra.mxu0 0.0
        %288 = vmatprep.subr.mxu0 0.0
        %289 = vmatpush1.msra.mxu0 0.0
        %290 = vmatprep.subr.mxu0 0.0
        %291 = vmatpush1.msra.mxu0 0.0
        %292 = vmatprep.subr.mxu0 0.0
        %293 = vmatpush1.msra.mxu0 0.0
        %294 = vmatprep.subr.mxu0 0.0
        %295 = vmatpush1.msra.mxu0 0.0
        %296 = vmatprep.subr.mxu0 0.0
        %297 = vmatpush1.msra.mxu0 0.0
        %298 = vmatprep.subr.mxu0 0.0
        %299 = vmatpush1.msra.mxu0 0.0
        %300 = vmatprep.subr.mxu0 0.0
        %301 = vmatpush1.msra.mxu0 0.0
        %302 = vmatprep.subr.mxu0 0.0
        %303 = vmatpush1.msra.mxu0 0.0
        %304 = vmatprep.subr.mxu0 0.0
        %305 = vmatpush1.msra.mxu0 0.0
        %306 = vmatprep.subr.mxu0 0.0
        %307 = vmatpush1.msra.mxu0 0.0
        %308 = vmatprep.subr.mxu0 0.0
        %309 = vmatpush1.msra.mxu0 0.0
        %310 = vmatprep.subr.mxu0 0.0
        %311 = vmatpush1.msra.mxu0 0.0
        %312 = vmatprep.subr.mxu0 0.0
        %313 = vmatpush1.msra.mxu0 0.0
        %314 = vmatprep.subr.mxu0 0.0
        %315 = vmatpush1.msra.mxu0 0.0
        %316 = vmatprep.subr.mxu0 0.0
        %317 = vmatpush1.msra.mxu0 0.0
        %318 = vmatprep.subr.mxu0 0.0
        %319 = vmatpush1.msra.mxu0 0.0
        %320 = vmatprep.subr.mxu0 0.0
        %321 = vmatpush1.msra.mxu0 0.0
        %322 = vmatprep.subr.mxu0 0.0
        %323 = vmatpush1.msra.mxu0 0.0
        %324 = vmatprep.subr.mxu0 0.0
        %325 = vmatpush1.msra.mxu0 0.0
        %326 = vmatprep.subr.mxu0 0.0
        %327 = vmatpush1.msra.mxu0 0.0
        %328 = vmatprep.subr.mxu0 0.0
        %329 = vmatpush1.msra.mxu0 0.0
        %330 = vmatprep.subr.mxu0 0.0
        %331 = vmatpush1.msra.mxu0 0.0
        %332 = vmatprep.subr.mxu0 0.0
        %333 = vmatpush1.msra.mxu0 0.0
        %334 = vmatprep.subr.mxu0 0.0
        %335 = vmatpush1.msra.mxu0 0.0
        %336 = vmatprep.subr.mxu0 0.0
        %337 = vmatpush1.msra.mxu0 0.0
        %338 = vmatprep.mubr.f32.mxu0 0.0
        %v339 = vand.u32 %v184, 4294901760
        %340 = vmatmul.mubr.f32.gmra.mrb[0].mxu0 %v339
        %v341 = vpop.f32.mrb[0].mxu0
        %v342 = vadd.f32 %v260, %v341
        %v343 = vpop.f32.mrb[0].mxu0
        %v344 = vadd.f32 %v262, %v343
        %345 = vdwg.mxu0
        %v346 = vand.u32 %v176, 4294901760
        %v347 = vsub.f32 %v176, %v346
        %348 = vmatprep.subr.mxu0 %v347
        %v349 = vand.u32 %v175, 4294901760
        %v350 = vsub.f32 %v175, %v349
        %351 = vmatpush1.msra.mxu0 %v350
        %352 = vmatprep.subr.mxu0 0.0
        %353 = vmatpush1.msra.mxu0 0.0
        %354 = vmatprep.subr.mxu0 0.0
        %355 = vmatpush1.msra.mxu0 0.0
        %356 = vmatprep.subr.mxu0 0.0
        %357 = vmatpush1.msra.mxu0 0.0
        %358 = vmatprep.subr.mxu0 0.0
        %359 = vmatpush1.msra.mxu0 0.0
        %360 = vmatprep.subr.mxu0 0.0
        %361 = vmatpush1.msra.mxu0 0.0
        %362 = vmatprep.subr.mxu0 0.0
        %363 = vmatpush1.msra.mxu0 0.0
        %364 = vmatprep.subr.mxu0 0.0
        %365 = vmatpush1.msra.mxu0 0.0
        %366 = vmatprep.subr.mxu0 0.0
        %367 = vmatpush1.msra.mxu0 0.0
        %368 = vmatprep.subr.mxu0 0.0
        %369 = vmatpush1.msra.mxu0 0.0
        %370 = vmatprep.subr.mxu0 0.0
        %371 = vmatpush1.msra.mxu0 0.0
        %372 = vmatprep.subr.mxu0 0.0
        %373 = vmatpush1.msra.mxu0 0.0
        %374 = vmatprep.subr.mxu0 0.0
        %375 = vmatpush1.msra.mxu0 0.0
        %376 = vmatprep.subr.mxu0 0.0
        %377 = vmatpush1.msra.mxu0 0.0
        %378 = vmatprep.subr.mxu0 0.0
        %379 = vmatpush1.msra.mxu0 0.0
        %380 = vmatprep.subr.mxu0 0.0
        %381 = vmatpush1.msra.mxu0 0.0
        %382 = vmatprep.subr.mxu0 0.0
        %383 = vmatpush1.msra.mxu0 0.0
        %384 = vmatprep.subr.mxu0 0.0
        %385 = vmatpush1.msra.mxu0 0.0
        %386 = vmatprep.subr.mxu0 0.0
        %387 = vmatpush1.msra.mxu0 0.0
        %388 = vmatprep.subr.mxu0 0.0
        %389 = vmatpush1.msra.mxu0 0.0
        %390 = vmatprep.subr.mxu0 0.0
        %391 = vmatpush1.msra.mxu0 0.0
        %392 = vmatprep.subr.mxu0 0.0
        %393 = vmatpush1.msra.mxu0 0.0
        %394 = vmatprep.subr.mxu0 0.0
        %395 = vmatpush1.msra.mxu0 0.0
        %396 = vmatprep.subr.mxu0 0.0
        %397 = vmatpush1.msra.mxu0 0.0
        %398 = vmatprep.subr.mxu0 0.0
        %399 = vmatpush1.msra.mxu0 0.0
        %400 = vmatprep.subr.mxu0 0.0
        %401 = vmatpush1.msra.mxu0 0.0
        %402 = vmatprep.subr.mxu0 0.0
        %403 = vmatpush1.msra.mxu0 0.0
        %404 = vmatprep.subr.mxu0 0.0
        %405 = vmatpush1.msra.mxu0 0.0
        %406 = vmatprep.subr.mxu0 0.0
        %407 = vmatpush1.msra.mxu0 0.0
        %408 = vmatprep.subr.mxu0 0.0
        %409 = vmatpush1.msra.mxu0 0.0
        %410 = vmatprep.subr.mxu0 0.0
        %411 = vmatpush1.msra.mxu0 0.0
        %412 = vmatprep.subr.mxu0 0.0
        %413 = vmatpush1.msra.mxu0 0.0
        %414 = vmatprep.mubr.f32.mxu0 0.0
        %v415 = vand.u32 %v184, 4294901760
        %v416 = vsub.f32 %v184, %v415
        %417 = vmatmul.mubr.f32.gmra.mrb[0].mxu0 %v416
        %v418 = vpop.f32.mrb[0].mxu0
        %v419 = vadd.f32 %v342, %v418
        %v420 = vpop.f32.mrb[0].mxu0
        %v421 = vadd.f32 %v344, %v420
        %422 = vdwg.mxu0
        %v423 = vand.u32 %v176, 4294901760
        %424 = vmatprep.subr.mxu0 %v423
        %v425 = vand.u32 %v175, 4294901760
        %426 = vmatpush1.msra.mxu0 %v425
        %427 = vmatprep.subr.mxu0 0.0
        %428 = vmatpush1.msra.mxu0 0.0
        %429 = vmatprep.subr.mxu0 0.0
        %430 = vmatpush1.msra.mxu0 0.0
        %431 = vmatprep.subr.mxu0 0.0
        %432 = vmatpush1.msra.mxu0 0.0
        %433 = vmatprep.subr.mxu0 0.0
        %434 = vmatpush1.msra.mxu0 0.0
        %435 = vmatprep.subr.mxu0 0.0
        %436 = vmatpush1.msra.mxu0 0.0
        %437 = vmatprep.subr.mxu0 0.0
        %438 = vmatpush1.msra.mxu0 0.0
        %439 = vmatprep.subr.mxu0 0.0
        %440 = vmatpush1.msra.mxu0 0.0
        %441 = vmatprep.subr.mxu0 0.0
        %442 = vmatpush1.msra.mxu0 0.0
        %443 = vmatprep.subr.mxu0 0.0
        %444 = vmatpush1.msra.mxu0 0.0
        %445 = vmatprep.subr.mxu0 0.0
        %446 = vmatpush1.msra.mxu0 0.0
        %447 = vmatprep.subr.mxu0 0.0
        %448 = vmatpush1.msra.mxu0 0.0
        %449 = vmatprep.subr.mxu0 0.0
        %450 = vmatpush1.msra.mxu0 0.0
        %451 = vmatprep.subr.mxu0 0.0
        %452 = vmatpush1.msra.mxu0 0.0
        %453 = vmatprep.subr.mxu0 0.0
        %454 = vmatpush1.msra.mxu0 0.0
        %455 = vmatprep.subr.mxu0 0.0
        %456 = vmatpush1.msra.mxu0 0.0
        %457 = vmatprep.subr.mxu0 0.0
        %458 = vmatpush1.msra.mxu0 0.0
        %459 = vmatprep.subr.mxu0 0.0
        %460 = vmatpush1.msra.mxu0 0.0
        %461 = vmatprep.subr.mxu0 0.0
        %462 = vmatpush1.msra.mxu0 0.0
        %463 = vmatprep.subr.mxu0 0.0
        %464 = vmatpush1.msra.mxu0 0.0
        %465 = vmatprep.subr.mxu0 0.0
        %466 = vmatpush1.msra.mxu0 0.0
        %467 = vmatprep.subr.mxu0 0.0
        %468 = vmatpush1.msra.mxu0 0.0
        %469 = vmatprep.subr.mxu0 0.0
        %470 = vmatpush1.msra.mxu0 0.0
        %471 = vmatprep.subr.mxu0 0.0
        %472 = vmatpush1.msra.mxu0 0.0
        %473 = vmatprep.subr.mxu0 0.0
        %474 = vmatpush1.msra.mxu0 0.0
        %475 = vmatprep.subr.mxu0 0.0
        %476 = vmatpush1.msra.mxu0 0.0
        %477 = vmatprep.subr.mxu0 0.0
        %478 = vmatpush1.msra.mxu0 0.0
        %479 = vmatprep.subr.mxu0 0.0
        %480 = vmatpush1.msra.mxu0 0.0
        %481 = vmatprep.subr.mxu0 0.0
        %482 = vmatpush1.msra.mxu0 0.0
        %483 = vmatprep.subr.mxu0 0.0
        %484 = vmatpush1.msra.mxu0 0.0
        %485 = vmatprep.subr.mxu0 0.0
        %486 = vmatpush1.msra.mxu0 0.0
        %487 = vmatprep.subr.mxu0 0.0
        %488 = vmatpush1.msra.mxu0 0.0
        %489 = vmatprep.mubr.f32.mxu0 0.0
        %v490 = vand.u32 %v184, 4294901760
        %v491 = vsub.f32 %v184, %v490
        %v492 = vand.u32 %v491, 4294901760
        %493 = vmatmul.mubr.f32.gmra.mrb[0].mxu0 %v492
        %v494 = vpop.f32.mrb[0].mxu0
        %v495 = vadd.f32 %v419, %v494
        %v496 = vpop.f32.mrb[0].mxu0
        %v497 = vadd.f32 %v421, %v496
        %498 = vdwg.mxu0
        %v499 = vand.u32 %v176, 4294901760
        %v500 = vsub.f32 %v176, %v499
        %v501 = vand.u32 %v500, 4294901760
        %502 = vmatprep.subr.mxu0 %v501
        %v503 = vand.u32 %v175, 4294901760
        %v504 = vsub.f32 %v175, %v503
        %v505 = vand.u32 %v504, 4294901760
        %506 = vmatpush1.msra.mxu0 %v505
        %507 = vmatprep.subr.mxu0 0.0
        %508 = vmatpush1.msra.mxu0 0.0
        %509 = vmatprep.subr.mxu0 0.0
        %510 = vmatpush1.msra.mxu0 0.0
        %511 = vmatprep.subr.mxu0 0.0
        %512 = vmatpush1.msra.mxu0 0.0
        %513 = vmatprep.subr.mxu0 0.0
        %514 = vmatpush1.msra.mxu0 0.0
        %515 = vmatprep.subr.mxu0 0.0
        %516 = vmatpush1.msra.mxu0 0.0
        %517 = vmatprep.subr.mxu0 0.0
        %518 = vmatpush1.msra.mxu0 0.0
        %519 = vmatprep.subr.mxu0 0.0
        %520 = vmatpush1.msra.mxu0 0.0
        %521 = vmatprep.subr.mxu0 0.0
        %522 = vmatpush1.msra.mxu0 0.0
        %523 = vmatprep.subr.mxu0 0.0
        %524 = vmatpush1.msra.mxu0 0.0
        %525 = vmatprep.subr.mxu0 0.0
        %526 = vmatpush1.msra.mxu0 0.0
        %527 = vmatprep.subr.mxu0 0.0
        %528 = vmatpush1.msra.mxu0 0.0
        %529 = vmatprep.subr.mxu0 0.0
        %530 = vmatpush1.msra.mxu0 0.0
        %531 = vmatprep.subr.mxu0 0.0
        %532 = vmatpush1.msra.mxu0 0.0
        %533 = vmatprep.subr.mxu0 0.0
        %534 = vmatpush1.msra.mxu0 0.0
        %535 = vmatprep.subr.mxu0 0.0
        %536 = vmatpush1.msra.mxu0 0.0
        %537 = vmatprep.subr.mxu0 0.0
        %538 = vmatpush1.msra.mxu0 0.0
        %539 = vmatprep.subr.mxu0 0.0
        %540 = vmatpush1.msra.mxu0 0.0
        %541 = vmatprep.subr.mxu0 0.0
        %542 = vmatpush1.msra.mxu0 0.0
        %543 = vmatprep.subr.mxu0 0.0
        %544 = vmatpush1.msra.mxu0 0.0
        %545 = vmatprep.subr.mxu0 0.0
        %546 = vmatpush1.msra.mxu0 0.0
        %547 = vmatprep.subr.mxu0 0.0
        %548 = vmatpush1.msra.mxu0 0.0
        %549 = vmatprep.subr.mxu0 0.0
        %550 = vmatpush1.msra.mxu0 0.0
        %551 = vmatprep.subr.mxu0 0.0
        %552 = vmatpush1.msra.mxu0 0.0
        %553 = vmatprep.subr.mxu0 0.0
        %554 = vmatpush1.msra.mxu0 0.0
        %555 = vmatprep.subr.mxu0 0.0
        %556 = vmatpush1.msra.mxu0 0.0
        %557 = vmatprep.subr.mxu0 0.0
        %558 = vmatpush1.msra.mxu0 0.0
        %559 = vmatprep.subr.mxu0 0.0
        %560 = vmatpush1.msra.mxu0 0.0
        %561 = vmatprep.subr.mxu0 0.0
        %562 = vmatpush1.msra.mxu0 0.0
        %563 = vmatprep.subr.mxu0 0.0
        %564 = vmatpush1.msra.mxu0 0.0
        %565 = vmatprep.subr.mxu0 0.0
        %566 = vmatpush1.msra.mxu0 0.0
        %567 = vmatprep.subr.mxu0 0.0
        %568 = vmatpush1.msra.mxu0 0.0
        %569 = vmatprep.mubr.f32.mxu0 0.0
        %v570 = vand.u32 %v184, 4294901760
        %571 = vmatmul.mubr.f32.gmra.mrb[0].mxu0 %v570
        %v572 = vpop.f32.mrb[0].mxu0
        %v573 = vadd.f32 %v495, %v572
        %v574 = vpop.f32.mrb[0].mxu0
        %v575 = vadd.f32 %v497, %v574
        %576 = vdwg.mxu0
        %v577 = vand.u32 %v176, 4294901760
        %578 = vmatprep.subr.mxu0 %v577
        %v579 = vand.u32 %v175, 4294901760
        %580 = vmatpush1.msra.mxu0 %v579
        %581 = vmatprep.subr.mxu0 0.0
        %582 = vmatpush1.msra.mxu0 0.0
        %583 = vmatprep.subr.mxu0 0.0
        %584 = vmatpush1.msra.mxu0 0.0
        %585 = vmatprep.subr.mxu0 0.0
        %586 = vmatpush1.msra.mxu0 0.0
        %587 = vmatprep.subr.mxu0 0.0
        %588 = vmatpush1.msra.mxu0 0.0
        %589 = vmatprep.subr.mxu0 0.0
        %590 = vmatpush1.msra.mxu0 0.0
        %591 = vmatprep.subr.mxu0 0.0
        %592 = vmatpush1.msra.mxu0 0.0
        %593 = vmatprep.subr.mxu0 0.0
        %594 = vmatpush1.msra.mxu0 0.0
        %595 = vmatprep.subr.mxu0 0.0
        %596 = vmatpush1.msra.mxu0 0.0
        %597 = vmatprep.subr.mxu0 0.0
        %598 = vmatpush1.msra.mxu0 0.0
        %599 = vmatprep.subr.mxu0 0.0
        %600 = vmatpush1.msra.mxu0 0.0
        %601 = vmatprep.subr.mxu0 0.0
        %602 = vmatpush1.msra.mxu0 0.0
        %603 = vmatprep.subr.mxu0 0.0
        %604 = vmatpush1.msra.mxu0 0.0
        %605 = vmatprep.subr.mxu0 0.0
        %606 = vmatpush1.msra.mxu0 0.0
        %607 = vmatprep.subr.mxu0 0.0
        %608 = vmatpush1.msra.mxu0 0.0
        %609 = vmatprep.subr.mxu0 0.0
        %610 = vmatpush1.msra.mxu0 0.0
        %611 = vmatprep.subr.mxu0 0.0
        %612 = vmatpush1.msra.mxu0 0.0
        %613 = vmatprep.subr.mxu0 0.0
        %614 = vmatpush1.msra.mxu0 0.0
        %615 = vmatprep.subr.mxu0 0.0
        %616 = vmatpush1.msra.mxu0 0.0
        %617 = vmatprep.subr.mxu0 0.0
        %618 = vmatpush1.msra.mxu0 0.0
        %619 = vmatprep.subr.mxu0 0.0
        %620 = vmatpush1.msra.mxu0 0.0
        %621 = vmatprep.subr.mxu0 0.0
        %622 = vmatpush1.msra.mxu0 0.0
        %623 = vmatprep.subr.mxu0 0.0
        %624 = vmatpush1.msra.mxu0 0.0
        %625 = vmatprep.subr.mxu0 0.0
        %626 = vmatpush1.msra.mxu0 0.0
        %627 = vmatprep.subr.mxu0 0.0
        %628 = vmatpush1.msra.mxu0 0.0
        %629 = vmatprep.subr.mxu0 0.0
        %630 = vmatpush1.msra.mxu0 0.0
        %631 = vmatprep.subr.mxu0 0.0
        %632 = vmatpush1.msra.mxu0 0.0
        %633 = vmatprep.subr.mxu0 0.0
        %634 = vmatpush1.msra.mxu0 0.0
        %635 = vmatprep.subr.mxu0 0.0
        %636 = vmatpush1.msra.mxu0 0.0
        %637 = vmatprep.subr.mxu0 0.0
        %638 = vmatpush1.msra.mxu0 0.0
        %639 = vmatprep.subr.mxu0 0.0
        %640 = vmatpush1.msra.mxu0 0.0
        %641 = vmatprep.subr.mxu0 0.0
        %642 = vmatpush1.msra.mxu0 0.0
        %643 = vmatprep.mubr.f32.mxu0 0.0
        %v644 = vand.u32 %v184, 4294901760
        %645 = vmatmul.mubr.f32.gmra.mrb[0].mxu0 %v644
        %v646 = vpop.f32.mrb[0].mxu0
        %v647 = vadd.f32 %v573, %v646
        %v648 = vpop.f32.mrb[0].mxu0
        %v649 = vadd.f32 %v575, %v648
        %650 = vdwg.mxu0
        %v651 = vxor.u32 %v647, 2147483648
        %v652 = vxor.u32 %v649, 2147483648
        %v653 = vmul.f32 %v651, 1.442695
        %v654 = vpow.pop %v653
        %v655 = vmul.f32 %v652, 1.442695
        %v656 = vpow.pop %v655
        %v657 = vadd.f32 %v654, 1.0
        %v658 = vadd.f32 %v656, 1.0
        %v659 = vrcp.pop %v657
        %v660 = vmul.f32 1.0, %v659
        %v661 = vrcp.pop %v658
        %v662 = vmul.f32 1.0, %v661
        %663 = vset.pattern.permute.xlu0 15
        %664 = vperm.xlu0 %663, %v177
        %v665 = vpop.permute.xlu0 %664
        %667 = vset.pattern.permute.xlu0 9
        %668 = vperm.xlu0 %667, %v177
        %v669 = vpop.permute.xlu0 %668
        %v671 = vlaneseq
        %v672 = vshrl.u32 %v671, 7
        %v673 = vsub.s32 0, %v672
        %v674 = vrot.slane %v660, %v673
        %v675 = vlaneseq
        %v676 = vshrl.u32 %v675, 7
        %v677 = vsub.s32 0, %v676
        %v678 = vrot.slane %v662, %v677
        %v679 = vmul.f32 %v669, %v674
        %v680 = vmul.f32 %v669, %v678
        %v681 = vadd.f32 %v665, %v679
        %v682 = vadd.f32 %v665, %v680
        %683 = vset.pattern.permute.xlu0 10
        %684 = vperm.xlu0 %683, %v177
        %v685 = vpop.permute.xlu0 %684
        %v687 = vlaneseq
        %v688 = vshrl.u32 %v687, 7
        %v689 = vsub.s32 1, %v688
        %v690 = vrot.slane %v660, %v689
        %v691 = vlaneseq
        %v692 = vshrl.u32 %v691, 7
        %v693 = vsub.s32 1, %v692
        %v694 = vrot.slane %v662, %v693
        %v695 = vmul.f32 %v685, %v690
        %v696 = vmul.f32 %v685, %v694
        %v697 = vadd.f32 %v681, %v695
        %v698 = vadd.f32 %v682, %v696
        %699 = vset.pattern.permute.xlu0 11
        %700 = vperm.xlu0 %699, %v177
        %v701 = vpop.permute.xlu0 %700
        %v703 = vlaneseq
        %v704 = vshrl.u32 %v703, 7
        %v705 = vsub.s32 2, %v704
        %v706 = vrot.slane %v660, %v705
        %v707 = vlaneseq
        %v708 = vshrl.u32 %v707, 7
        %v709 = vsub.s32 2, %v708
        %v710 = vrot.slane %v662, %v709
        %v711 = vmul.f32 %v701, %v706
        %v712 = vmul.f32 %v701, %v710
        %v713 = vadd.f32 %v697, %v711
        %v714 = vadd.f32 %v698, %v712
        %715 = vset.pattern.permute.xlu0 12
        %716 = vperm.xlu0 %715, %v177
        %v717 = vpop.permute.xlu0 %716
        %v719 = vlaneseq
        %v720 = vshrl.u32 %v719, 7
        %v721 = vsub.s32 3, %v720
        %v722 = vrot.slane %v660, %v721
        %v723 = vlaneseq
        %v724 = vshrl.u32 %v723, 7
        %v725 = vsub.s32 3, %v724
        %v726 = vrot.slane %v662, %v725
        %v727 = vmul.f32 %v717, %v722
        %v728 = vmul.f32 %v717, %v726
        %v729 = vadd.f32 %v713, %v727
        %v730 = vadd.f32 %v714, %v728
        %731 = vset.pattern.permute.xlu0 13
        %732 = vperm.xlu0 %731, %v177
        %v733 = vpop.permute.xlu0 %732
        %v735 = vlaneseq
        %v736 = vshrl.u32 %v735, 7
        %v737 = vsub.s32 4, %v736
        %v738 = vrot.slane %v660, %v737
        %v739 = vlaneseq
        %v740 = vshrl.u32 %v739, 7
        %v741 = vsub.s32 4, %v740
        %v742 = vrot.slane %v662, %v741
        %v743 = vmul.f32 %v733, %v738
        %v744 = vmul.f32 %v733, %v742
        %v745 = vadd.f32 %v729, %v743
        %v746 = vadd.f32 %v730, %v744
        %747 = vset.pattern.permute.xlu0 14
        %748 = vperm.xlu0 %747, %v177
        %v749 = vpop.permute.xlu0 %748
        %v751 = vlaneseq
        %v752 = vshrl.u32 %v751, 7
        %v753 = vsub.s32 5, %v752
        %v754 = vrot.slane %v660, %v753
        %v755 = vlaneseq
        %v756 = vshrl.u32 %v755, 7
        %v757 = vsub.s32 5, %v756
        %v758 = vrot.slane %v662, %v757
        %v759 = vmul.f32 %v749, %v754
        %v760 = vmul.f32 %v749, %v758
        %v761 = vadd.f32 %v745, %v759
        %v762 = vadd.f32 %v746, %v760
        %v763 = vxor.u32 %v761, 2147483648
        %v764 = vxor.u32 %v762, 2147483648
        %v765 = vmul.f32 %v763, 1.442695
        %v766 = vpow.pop %v765
        %v767 = vmul.f32 %v764, 1.442695
        %v768 = vpow.pop %v767
        %v769 = vadd.f32 %v766, 1.0
        %v770 = vadd.f32 %v768, 1.0
        %v771 = vrcp.pop %v769
        %v772 = vmul.f32 1.0, %v771
        %v773 = vrcp.pop %v770
        %v774 = vmul.f32 1.0, %v773
        %775 = vset.pattern.permute.xlu0 20
        %776 = vperm.xlu0 %775, %v177
        %v777 = vpop.permute.xlu0 %776
        %779 = vset.pattern.permute.xlu0 16
        %780 = vperm.xlu0 %779, %v177
        %v781 = vpop.permute.xlu0 %780
        %v783 = vmul.f32 %v781, %v772
        %v784 = vmul.f32 %v781, %v774
        %v785 = vadd.f32 %v777, %v783
        %v786 = vadd.f32 %v777, %v784
        %787 = vset.pattern.permute.xlu0 17
        %788 = vperm.xlu0 %787, %v177
        %v789 = vpop.permute.xlu0 %788
        %v793 = vrot.slane %v772, 1
        %v794 = vrot.slane %v774, 1
        %v797 = vmul.f32 %v789, %v793
        %v798 = vmul.f32 %v789, %v794
        %v799 = vadd.f32 %v785, %v797
        %v800 = vadd.f32 %v786, %v798
        %801 = vset.pattern.permute.xlu0 18
        %802 = vperm.xlu0 %801, %v177
        %v803 = vpop.permute.xlu0 %802
        %v805 = vrot.slane %v772, 2
        %v806 = vrot.slane %v774, 2
        %v809 = vmul.f32 %v803, %v805
        %v810 = vmul.f32 %v803, %v806
        %v811 = vadd.f32 %v799, %v809
        %v812 = vadd.f32 %v800, %v810
        %813 = vset.pattern.permute.xlu0 19
        %814 = vperm.xlu0 %813, %v177
        %v815 = vpop.permute.xlu0 %814
        %v817 = vrot.slane %v772, 3
        %v818 = vrot.slane %v774, 3
        %v821 = vmul.f32 %v815, %v817
        %v822 = vmul.f32 %v815, %v818
        %v823 = vadd.f32 %v811, %v821
        %v824 = vadd.f32 %v812, %v822
        %v825 = vxor.u32 %v823, 2147483648
        %v826 = vxor.u32 %v824, 2147483648
        %v827 = vmul.f32 %v825, 1.442695
        %v828 = vpow.pop %v827
        %v829 = vmul.f32 %v826, 1.442695
        %v830 = vpow.pop %v829
        %v831 = vadd.f32 %v828, 1.0
        %v832 = vadd.f32 %v830, 1.0
        %v833 = vrcp.pop %v831
        %v834 = vmul.f32 1.0, %v833
        %v835 = vrcp.pop %v832
        %v836 = vmul.f32 1.0, %v835
        %v839 = vcombine.low %v834, %v836
        %v841 = vunpack.c.l.s4 1966171168
        %v842 = vunpack.c.0.s8 %v841
        %v843 = vlaneseq
        %v844 = vshrl.u32 %v843, 7
        %v845 = vsub.s32 %v842, %v844
        %v846 = vrot.slane %v839, %v845
        %v848 = vunpack.c.l.s4 1966171168
        %v849 = vunpack.c.0.s8 %v848
        %v850 = vlaneseq
        %v851 = vshrl.u32 %v850, 7
        %v852 = vsub.s32 %v849, %v851
        %v853 = vrot.slane %v846, %v852
        %v855 = vlaneseq
        %vm856 = vcmp.ge.s32.totalorder %v855, 0
        %vm857 = vcmp.lt.s32.totalorder %v855, 256
        %vm858 = vmand %vm856, %vm857
        %859 = vst.msk [vmem:[%s172] sm:$0x3] %vm858, %v853
        %s860 = sand.u32 %s75, 1
        %s861 = scalar_lea.sflag [#allocation4], %s860
        %s862 = sand.u32 %s75, 1
        %s863 = smul.addr %s862, 2
        %s864 = scalar_lea.vmem [#allocation7], %s863
        // Predicated region
        $region37: #{tpu_custom_call.1} parent=27 // pred_check
          %p865 = pneg %p85
        $region38: #{tpu_custom_call.1} parent=27 // pred_check_branch
          %867 = sbr.rel (%p865) target = $region40
        $region39: #{tpu_custom_call.1} parent=27 // pred_region
          %s868 = smul.u32 2, %s20
          %s870 = ssub.s32 32, 32
          %871 = vsyncadd %s861, %s870
          %s872 = smul.addr %s868, 16
          %s873 = scalar_lea.hbm %s2, %s872
          %s875 = sshll.u32 %s864, 4
          %s876 = int_to_ptr.vmem [resolvable:$true] %s875
          %878 = dma.vmem_to_hbm [thread:$0]  %s876, 32, %s873, %s861
        $region40: #{tpu_custom_call.1} parent=27 // pred_fallthru
          _
      $region28: #{tpu_custom_call.1} parent=5 // pred_fallthru
        _
      %p879 = scmp.le.s32.totalorder 2, %s15
      // Predicated region
      $region41: #{tpu_custom_call.1} parent=5 // pred_check
        %p880 = pneg %p879
      $region42: #{tpu_custom_call.1} parent=5 // pred_check_branch
        %882 = sbr.rel (%p880) target = $region44
      $region43: #{tpu_custom_call.1} parent=5 // pred_region
        %s883 = ssub.s32 %s15, 2
        // Predicated region
        $region45: #{tpu_custom_call.1} parent=43 // pred_check
          %p884 = pneg %p91
        $region46: #{tpu_custom_call.1} parent=43 // pred_check_branch
          %886 = sbr.rel (%p884) target = $region48
        $region47: #{tpu_custom_call.1} parent=43 // pred_region
          %s887 = sand.u32 %s76, 1
          %s888 = scalar_lea.sflag [#allocation4], %s887
          %s889 = sand.u32 %s76, 1
          %s890 = smul.addr %s889, 2
          %s891 = scalar_lea.vmem [#allocation7], %s890
          %892 = dma.done %s888, 32
        $region48: #{tpu_custom_call.1} parent=43 // pred_fallthru
          _
      $region44: #{tpu_custom_call.1} parent=5 // pred_fallthru
        _
    $region6: #{tpu_custom_call.1} parent=1 // loop_footer
      %s19 = sadd.s32 1, %s15
    $region7: #{tpu_custom_call.1} parent=1 // loop_footer_branch
      %14 = sbr.rel target = $region3
    $region8: #{tpu_custom_call.1} parent=1 // loop_exit
      _
    %893 = vsyncpa [#allocation3], 1
    %s894 = scalar_lea.sflag [#allocation3], 1
    %895 = vsyncpa %s894, 1
    %896 = vsyncpa [#allocation6], 1
    %897 = vsyncpa [#allocation4], 1
    %s898 = scalar_lea.sflag [#allocation4], 1
    %899 = vsyncpa %s898, 1

</llo_original>
